<compile_context>
chip_gen: v5e
topology: v5e:2x2
jax: 0.10.0
libtpu: 0.0.40
codegen_flags: <defaults>
</compile_context>

<pallas_src>
import functools
import math

import jax
import jax.numpy as jnp
from jax.experimental import pallas as pl
from jax.experimental.pallas import tpu as pltpu


# -----------------------------------------------------------------------------
# Fused kernel: full 8-layer forward pass, activation never leaves on-chip mem.
#
# Operands (all f32, packed ONCE in the wrapper, F = max(nfeat, nhid, nclass)):
#   x_p      : [n_diff, F]                      zero-padded node features
#   adj_pack : [R, n_diff + R]                  cols [0,n_diff) = adj_d[:R,:],
#                                               cols [n_diff, ..) = adj
#   wb       : [8, F + 1, F]                    rows [0,F) = W_l, row F = b_l
#   masks    : [3, R, F]                        inverted-dropout masks
# -----------------------------------------------------------------------------
def _fused_gcn_kernel(x_ref, adjp_ref, wb_ref, mask_ref, o_ref,
                      *, n_diff, maxf):
    adj_d = adjp_ref[:, :n_diff]        # [R, n_diff]  (already row-sliced)
    adj = adjp_ref[:, n_diff:]          # [R, R]

    def gc(h, a, layer, relu):
        wb = wb_ref[layer]              # [F + 1, F]
        w = wb[:maxf, :]                # [F, F]
        b = wb[maxf:maxf + 1, :]        # [1, F]
        s = jnp.dot(h, w, preferred_element_type=jnp.float32)
        o = jnp.dot(a, s, preferred_element_type=jnp.float32) + b
        return jnp.maximum(o, 0.0) if relu else o

    # gc1 on the diffusion graph; aggregation only produces the kept rows.
    h = gc(x_ref[...], adj_d, 0, True)

    # dropout -> gc2 -> relu -> gc3 -> relu
    h = h * mask_ref[0]
    h = gc(h, adj, 1, True)
    h = gc(h, adj, 2, True)

    # dropout -> gc4 -> relu -> gc5 -> relu
    h = h * mask_ref[1]
    h = gc(h, adj, 3, True)
    h = gc(h, adj, 4, True)

    # dropout -> gc6 -> relu -> gc7 -> relu
    h = h * mask_ref[2]
    h = gc(h, adj, 5, True)
    h = gc(h, adj, 6, True)

    # gc8, no relu.  Full-tile store; [:, :nclass] narrowing is wrapper-side.
    o_ref[...] = gc(h, adj, 7, False)


# -----------------------------------------------------------------------------
# Jitted forward around the single pallas_call.  Packed operands are built once
# outside this function; jit makes the call path free of per-call repacking.
# -----------------------------------------------------------------------------
@functools.partial(jax.jit, static_argnames=("n_diff", "maxf", "nclass"))
def fused_forward(x_p, adj_pack, wb_stack, masks, *, n_diff, maxf, nclass):
    num_remain = adj_pack.shape[0]
    kernel = functools.partial(_fused_gcn_kernel, n_diff=n_diff, maxf=maxf)
    vmem = pl.BlockSpec(memory_space=pltpu.MemorySpace.VMEM)
    out_full = pl.pallas_call(
        kernel,
        out_shape=jax.ShapeDtypeStruct((num_remain, maxf), jnp.float32),
        in_specs=[vmem] * 4,
        out_specs=vmem,
    )(x_p, adj_pack, wb_stack, masks)
    return out_full[:, :nclass]         # free layout plumbing in the wrapper

# TODO(synk): for throughput (many graphs), batch samples along the row axis
# and add a leading grid axis with dimension_semantics=("parallel",) so v7x's
# two TensorCores are both used; a single tiny graph stays grid-less on purpose.


# -----------------------------------------------------------------------------
# Parameter init (matches GraphConvolution.reset_parameters: U(-stdv, stdv),
# stdv = 1/sqrt(out_features)), deterministic via PRNGKey.
# -----------------------------------------------------------------------------
def init_gc_params(key, in_features, out_features):
    stdv = 1.0 / math.sqrt(out_features)
    kw, kb = jax.random.split(key)
    w = jax.random.uniform(kw, (in_features, out_features),
                           minval=-stdv, maxval=stdv, dtype=jnp.float32)
    b = jax.random.uniform(kb, (out_features,),
                           minval=-stdv, maxval=stdv, dtype=jnp.float32)
    return w, b


def init_model_params(key, nfeat=3, nhid=5, nclass=3):
    dims = [(nfeat, nhid), (nhid, nhid), (nhid, nhid), (nhid, nhid),
            (nhid, nhid), (nhid, nhid), (nhid, nhid), (nhid, nclass)]
    keys = jax.random.split(key, len(dims))
    return [init_gc_params(k, i, o) for k, (i, o) in zip(keys, dims)]


# -----------------------------------------------------------------------------
# One-time packing helpers (hoisted out of the per-call path).
# -----------------------------------------------------------------------------
def pack_params(params):
    """Stack all 8 layers into one zero-padded [8, F+1, F] tensor (bias folded
    in as the last row)."""
    maxf = max(max(w.shape) for w, _ in params)

    def pad_wb(w, b):
        wb = jnp.zeros((maxf + 1, maxf), dtype=jnp.float32)
        wb = wb.at[:w.shape[0], :w.shape[1]].set(w.astype(jnp.float32))
        wb = wb.at[maxf, :b.shape[0]].set(b.astype(jnp.float32))
        return wb

    wb_stack = jnp.stack([pad_wb(w, b) for w, b in params])
    return wb_stack, maxf


def pack_inputs(x, adj, adj_d, num_remain, maxf):
    """Zero-pad x to F columns and pack [adj_d[:num_remain,:] | adj] into one
    buffer so the kernel takes 4 operands instead of 6."""
    n_diff = adj_d.shape[0]
    x_p = jnp.zeros((n_diff, maxf), dtype=jnp.float32)
    x_p = x_p.at[:, :x.shape[1]].set(x.astype(jnp.float32))
    adj_pack = jnp.concatenate(
        [adj_d[:num_remain, :].astype(jnp.float32), adj.astype(jnp.float32)],
        axis=1)
    return x_p, adj_pack


def make_dropout_masks(key, num_remain, maxf, dropout=0.5, if_dropout=True):
    """Inverted dropout masks (0 or 1/(1-p)); precomputed once per forward.
    Pass a fresh key per training step -- a fixed key would repeat the mask."""
    if if_dropout and dropout > 0.0:
        keep = jax.random.bernoulli(key, 1.0 - dropout, (3, num_remain, maxf))
        return keep.astype(jnp.float32) * (1.0 / (1.0 - dropout))
    return jnp.ones((3, num_remain, maxf), dtype=jnp.float32)


# -----------------------------------------------------------------------------
# Pure-JAX reference (literal translation of the torch module, same masks).
# -----------------------------------------------------------------------------
def _reference_forward(params, x, adj, adj_d, num_remain, masks):
    def gc(h, a, w, b, relu):
        s = jnp.dot(h, w)
        o = jnp.dot(a, s) + b.reshape(1, -1)
        return jnp.maximum(o, 0.0) if relu else o

    (w1, b1), (w2, b2), (w3, b3), (w4, b4), \
        (w5, b5), (w6, b6), (w7, b7), (w8, b8) = params
    h = gc(x, adj_d, w1, b1, True)[:num_remain]          # gc1 + relu + split
    h = h * masks[0][:, :h.shape[1]]
    h = gc(h, adj, w2, b2, True)
    h = gc(h, adj, w3, b3, True)
    h = h * masks[1][:, :h.shape[1]]
    h = gc(h, adj, w4, b4, True)
    h = gc(h, adj, w5, b5, True)
    h = h * masks[2][:, :h.shape[1]]
    h = gc(h, adj, w6, b6, True)
    h = gc(h, adj, w7, b7, True)
    return gc(h, adj, w8, b8, False)


if __name__ == "__main__":
    nfeat, nhid, nclass = 3, 5, 3
    n_diff = 12       # nodes in the diffusion graph (rows of x / adj_d)
    num_remain = 8    # nodes kept after split (rows/cols of adj)

    key = jax.random.PRNGKey(0)
    k_params, k_x, k_ad, k_a, k_drop = jax.random.split(key, 5)

    params = init_model_params(k_params, nfeat, nhid, nclass)

    x = jax.random.normal(k_x, (n_diff, nfeat), dtype=jnp.float32)

    # dense symmetric "adjacency" matrices with self loops (values arbitrary);
    # torch.spmm's sparse matmul is realized as a dense matmul here.
    adj_d = jax.random.uniform(k_ad, (n_diff, n_diff), dtype=jnp.float32)
    adj_d = 0.5 * (adj_d + adj_d.T) + jnp.eye(n_diff, dtype=jnp.float32)
    adj = jax.random.uniform(k_a, (num_remain, num_remain), dtype=jnp.float32)
    adj = 0.5 * (adj + adj.T) + jnp.eye(num_remain, dtype=jnp.float32)

    # ---- one-time packing (cached across forward calls) ----
    wb_stack, maxf = pack_params(params)
    x_p, adj_pack = pack_inputs(x, adj, adj_d, num_remain, maxf)
    masks = make_dropout_masks(k_drop, num_remain, maxf,
                               dropout=0.5, if_dropout=True)
    wb_stack, x_p, adj_pack, masks = jax.block_until_ready(
        (wb_stack, x_p, adj_pack, masks))

    # ---- fused forward (single pallas_call inside a jitted wrapper) ----
    out = fused_forward(x_p, adj_pack, wb_stack, masks,
                        n_diff=n_diff, maxf=maxf, nclass=nclass)
    out = jax.block_until_ready(out)

    ref = _reference_forward(params, x, adj, adj_d, num_remain, masks)
    assert out.shape == (num_remain, nclass), out.shape
    assert out.dtype == jnp.float32
    assert jnp.allclose(out, ref, rtol=1e-2, atol=1e-2), \
        float(jnp.max(jnp.abs(out - ref)))
    print("KERNEL_OK")
</pallas_src>

<mosaic_0001>
module attributes {stable_mosaic.version = 11 : i64} {
  func.func @_fused_gcn_kernel(%arg0: memref<12x5xf32, #tpu.memory_space<vmem>>, %arg1: memref<8x20xf32, #tpu.memory_space<vmem>>, %arg2: memref<8x6x5xf32, #tpu.memory_space<vmem>>, %arg3: memref<3x8x5xf32, #tpu.memory_space<vmem>>, %arg4: memref<8x5xf32, #tpu.memory_space<vmem>>) attributes {dimension_semantics = [], scalar_prefetch = 0 : i64, scratch_operands = 0 : i64, tpu.core_type = #tpu.core_type<tc>} {
    %c0 = arith.constant 0 : index
    %c0_0 = arith.constant 0 : index
    %0 = vector.load %arg1[%c0, %c0_0] : memref<8x20xf32, #tpu.memory_space<vmem>>, vector<8x12xf32>
    %c0_1 = arith.constant 0 : index
    %c12 = arith.constant 12 : index
    %1 = vector.load %arg1[%c0_1, %c12] : memref<8x20xf32, #tpu.memory_space<vmem>>, vector<8x8xf32>
    %c0_2 = arith.constant 0 : index
    %c0_3 = arith.constant 0 : index
    %2 = vector.load %arg0[%c0_2, %c0_3] : memref<12x5xf32, #tpu.memory_space<vmem>>, vector<12x5xf32>
    %c0_4 = arith.constant 0 : index
    %c0_5 = arith.constant 0 : index
    %c0_6 = arith.constant 0 : index
    %3 = vector.load %arg2[%c0_4, %c0_5, %c0_6] : memref<8x6x5xf32, #tpu.memory_space<vmem>>, vector<1x6x5xf32>
    %4 = vector.shape_cast %3 : vector<1x6x5xf32> to vector<6x5xf32>
    %5 = vector.extract_strided_slice %4 {offsets = [0, 0], sizes = [5, 5], strides = [1, 1]} : vector<6x5xf32> to vector<5x5xf32>
    %6 = vector.extract_strided_slice %4 {offsets = [5, 0], sizes = [1, 5], strides = [1, 1]} : vector<6x5xf32> to vector<1x5xf32>
    %cst = arith.constant dense<0.000000e+00> : vector<12x5xf32>
    %7 = tpu.matmul %2, %5, %cst {dimension_numbers = #tpu.dot_dimension_numbers<[1], [0], [0], [1], [0, 0, 1, 1], [], []>} : vector<12x5xf32>, vector<5x5xf32>, vector<12x5xf32> -> vector<12x5xf32>
    %cst_7 = arith.constant dense<0.000000e+00> : vector<8x5xf32>
    %8 = tpu.matmul %0, %7, %cst_7 {dimension_numbers = #tpu.dot_dimension_numbers<[1], [0], [0], [1], [0, 0, 1, 1], [], []>} : vector<8x12xf32>, vector<12x5xf32>, vector<8x5xf32> -> vector<8x5xf32>
    %9 = vector.broadcast %6 : vector<1x5xf32> to vector<8x5xf32>
    %10 = arith.addf %8, %9 : vector<8x5xf32>
    %cst_8 = arith.constant 0.000000e+00 : f32
    %11 = vector.broadcast %cst_8 : f32 to vector<8x5xf32>
    %12 = arith.maximumf %10, %11 : vector<8x5xf32>
    %c0_9 = arith.constant 0 : index
    %c0_10 = arith.constant 0 : index
    %c0_11 = arith.constant 0 : index
    %13 = vector.load %arg3[%c0_9, %c0_10, %c0_11] : memref<3x8x5xf32, #tpu.memory_space<vmem>>, vector<1x8x5xf32>
    %14 = vector.shape_cast %13 : vector<1x8x5xf32> to vector<8x5xf32>
    %15 = arith.mulf %12, %14 : vector<8x5xf32>
    %c1 = arith.constant 1 : index
    %c0_12 = arith.constant 0 : index
    %c0_13 = arith.constant 0 : index
    %16 = vector.load %arg2[%c1, %c0_12, %c0_13] : memref<8x6x5xf32, #tpu.memory_space<vmem>>, vector<1x6x5xf32>
    %17 = vector.shape_cast %16 : vector<1x6x5xf32> to vector<6x5xf32>
    %18 = vector.extract_strided_slice %17 {offsets = [0, 0], sizes = [5, 5], strides = [1, 1]} : vector<6x5xf32> to vector<5x5xf32>
    %19 = vector.extract_strided_slice %17 {offsets = [5, 0], sizes = [1, 5], strides = [1, 1]} : vector<6x5xf32> to vector<1x5xf32>
    %cst_14 = arith.constant dense<0.000000e+00> : vector<8x5xf32>
    %20 = tpu.matmul %15, %18, %cst_14 {dimension_numbers = #tpu.dot_dimension_numbers<[1], [0], [0], [1], [0, 0, 1, 1], [], []>} : vector<8x5xf32>, vector<5x5xf32>, vector<8x5xf32> -> vector<8x5xf32>
    %cst_15 = arith.constant dense<0.000000e+00> : vector<8x5xf32>
    %21 = tpu.matmul %1, %20, %cst_15 {dimension_numbers = #tpu.dot_dimension_numbers<[1], [0], [0], [1], [0, 0, 1, 1], [], []>} : vector<8x8xf32>, vector<8x5xf32>, vector<8x5xf32> -> vector<8x5xf32>
    %22 = vector.broadcast %19 : vector<1x5xf32> to vector<8x5xf32>
    %23 = arith.addf %21, %22 : vector<8x5xf32>
    %cst_16 = arith.constant 0.000000e+00 : f32
    %24 = vector.broadcast %cst_16 : f32 to vector<8x5xf32>
    %25 = arith.maximumf %23, %24 : vector<8x5xf32>
    %c2 = arith.constant 2 : index
    %c0_17 = arith.constant 0 : index
    %c0_18 = arith.constant 0 : index
    %26 = vector.load %arg2[%c2, %c0_17, %c0_18] : memref<8x6x5xf32, #tpu.memory_space<vmem>>, vector<1x6x5xf32>
    %27 = vector.shape_cast %26 : vector<1x6x5xf32> to vector<6x5xf32>
    %28 = vector.extract_strided_slice %27 {offsets = [0, 0], sizes = [5, 5], strides = [1, 1]} : vector<6x5xf32> to vector<5x5xf32>
    %29 = vector.extract_strided_slice %27 {offsets = [5, 0], sizes = [1, 5], strides = [1, 1]} : vector<6x5xf32> to vector<1x5xf32>
    %cst_19 = arith.constant dense<0.000000e+00> : vector<8x5xf32>
    %30 = tpu.matmul %25, %28, %cst_19 {dimension_numbers = #tpu.dot_dimension_numbers<[1], [0], [0], [1], [0, 0, 1, 1], [], []>} : vector<8x5xf32>, vector<5x5xf32>, vector<8x5xf32> -> vector<8x5xf32>
    %cst_20 = arith.constant dense<0.000000e+00> : vector<8x5xf32>
    %31 = tpu.matmul %1, %30, %cst_20 {dimension_numbers = #tpu.dot_dimension_numbers<[1], [0], [0], [1], [0, 0, 1, 1], [], []>} : vector<8x8xf32>, vector<8x5xf32>, vector<8x5xf32> -> vector<8x5xf32>
    %32 = vector.broadcast %29 : vector<1x5xf32> to vector<8x5xf32>
    %33 = arith.addf %31, %32 : vector<8x5xf32>
    %cst_21 = arith.constant 0.000000e+00 : f32
    %34 = vector.broadcast %cst_21 : f32 to vector<8x5xf32>
    %35 = arith.maximumf %33, %34 : vector<8x5xf32>
    %c1_22 = arith.constant 1 : index
    %c0_23 = arith.constant 0 : index
    %c0_24 = arith.constant 0 : index
    %36 = vector.load %arg3[%c1_22, %c0_23, %c0_24] : memref<3x8x5xf32, #tpu.memory_space<vmem>>, vector<1x8x5xf32>
    %37 = vector.shape_cast %36 : vector<1x8x5xf32> to vector<8x5xf32>
    %38 = arith.mulf %35, %37 : vector<8x5xf32>
    %c3 = arith.constant 3 : index
    %c0_25 = arith.constant 0 : index
    %c0_26 = arith.constant 0 : index
    %39 = vector.load %arg2[%c3, %c0_25, %c0_26] : memref<8x6x5xf32, #tpu.memory_space<vmem>>, vector<1x6x5xf32>
    %40 = vector.shape_cast %39 : vector<1x6x5xf32> to vector<6x5xf32>
    %41 = vector.extract_strided_slice %40 {offsets = [0, 0], sizes = [5, 5], strides = [1, 1]} : vector<6x5xf32> to vector<5x5xf32>
    %42 = vector.extract_strided_slice %40 {offsets = [5, 0], sizes = [1, 5], strides = [1, 1]} : vector<6x5xf32> to vector<1x5xf32>
    %cst_27 = arith.constant dense<0.000000e+00> : vector<8x5xf32>
    %43 = tpu.matmul %38, %41, %cst_27 {dimension_numbers = #tpu.dot_dimension_numbers<[1], [0], [0], [1], [0, 0, 1, 1], [], []>} : vector<8x5xf32>, vector<5x5xf32>, vector<8x5xf32> -> vector<8x5xf32>
    %cst_28 = arith.constant dense<0.000000e+00> : vector<8x5xf32>
    %44 = tpu.matmul %1, %43, %cst_28 {dimension_numbers = #tpu.dot_dimension_numbers<[1], [0], [0], [1], [0, 0, 1, 1], [], []>} : vector<8x8xf32>, vector<8x5xf32>, vector<8x5xf32> -> vector<8x5xf32>
    %45 = vector.broadcast %42 : vector<1x5xf32> to vector<8x5xf32>
    %46 = arith.addf %44, %45 : vector<8x5xf32>
    %cst_29 = arith.constant 0.000000e+00 : f32
    %47 = vector.broadcast %cst_29 : f32 to vector<8x5xf32>
    %48 = arith.maximumf %46, %47 : vector<8x5xf32>
    %c4 = arith.constant 4 : index
    %c0_30 = arith.constant 0 : index
    %c0_31 = arith.constant 0 : index
    %49 = vector.load %arg2[%c4, %c0_30, %c0_31] : memref<8x6x5xf32, #tpu.memory_space<vmem>>, vector<1x6x5xf32>
    %50 = vector.shape_cast %49 : vector<1x6x5xf32> to vector<6x5xf32>
    %51 = vector.extract_strided_slice %50 {offsets = [0, 0], sizes = [5, 5], strides = [1, 1]} : vector<6x5xf32> to vector<5x5xf32>
    %52 = vector.extract_strided_slice %50 {offsets = [5, 0], sizes = [1, 5], strides = [1, 1]} : vector<6x5xf32> to vector<1x5xf32>
    %cst_32 = arith.constant dense<0.000000e+00> : vector<8x5xf32>
    %53 = tpu.matmul %48, %51, %cst_32 {dimension_numbers = #tpu.dot_dimension_numbers<[1], [0], [0], [1], [0, 0, 1, 1], [], []>} : vector<8x5xf32>, vector<5x5xf32>, vector<8x5xf32> -> vector<8x5xf32>
    %cst_33 = arith.constant dense<0.000000e+00> : vector<8x5xf32>
    %54 = tpu.matmul %1, %53, %cst_33 {dimension_numbers = #tpu.dot_dimension_numbers<[1], [0], [0], [1], [0, 0, 1, 1], [], []>} : vector<8x8xf32>, vector<8x5xf32>, vector<8x5xf32> -> vector<8x5xf32>
    %55 = vector.broadcast %52 : vector<1x5xf32> to vector<8x5xf32>
    %56 = arith.addf %54, %55 : vector<8x5xf32>
    %cst_34 = arith.constant 0.000000e+00 : f32
    %57 = vector.broadcast %cst_34 : f32 to vector<8x5xf32>
    %58 = arith.maximumf %56, %57 : vector<8x5xf32>
    %c2_35 = arith.constant 2 : index
    %c0_36 = arith.constant 0 : index
    %c0_37 = arith.constant 0 : index
    %59 = vector.load %arg3[%c2_35, %c0_36, %c0_37] : memref<3x8x5xf32, #tpu.memory_space<vmem>>, vector<1x8x5xf32>
    %60 = vector.shape_cast %59 : vector<1x8x5xf32> to vector<8x5xf32>
    %61 = arith.mulf %58, %60 : vector<8x5xf32>
    %c5 = arith.constant 5 : index
    %c0_38 = arith.constant 0 : index
    %c0_39 = arith.constant 0 : index
    %62 = vector.load %arg2[%c5, %c0_38, %c0_39] : memref<8x6x5xf32, #tpu.memory_space<vmem>>, vector<1x6x5xf32>
    %63 = vector.shape_cast %62 : vector<1x6x5xf32> to vector<6x5xf32>
    %64 = vector.extract_strided_slice %63 {offsets = [0, 0], sizes = [5, 5], strides = [1, 1]} : vector<6x5xf32> to vector<5x5xf32>
    %65 = vector.extract_strided_slice %63 {offsets = [5, 0], sizes = [1, 5], strides = [1, 1]} : vector<6x5xf32> to vector<1x5xf32>
    %cst_40 = arith.constant dense<0.000000e+00> : vector<8x5xf32>
    %66 = tpu.matmul %61, %64, %cst_40 {dimension_numbers = #tpu.dot_dimension_numbers<[1], [0], [0], [1], [0, 0, 1, 1], [], []>} : vector<8x5xf32>, vector<5x5xf32>, vector<8x5xf32> -> vector<8x5xf32>
    %cst_41 = arith.constant dense<0.000000e+00> : vector<8x5xf32>
    %67 = tpu.matmul %1, %66, %cst_41 {dimension_numbers = #tpu.dot_dimension_numbers<[1], [0], [0], [1], [0, 0, 1, 1], [], []>} : vector<8x8xf32>, vector<8x5xf32>, vector<8x5xf32> -> vector<8x5xf32>
    %68 = vector.broadcast %65 : vector<1x5xf32> to vector<8x5xf32>
    %69 = arith.addf %67, %68 : vector<8x5xf32>
    %cst_42 = arith.constant 0.000000e+00 : f32
    %70 = vector.broadcast %cst_42 : f32 to vector<8x5xf32>
    %71 = arith.maximumf %69, %70 : vector<8x5xf32>
    %c6 = arith.constant 6 : index
    %c0_43 = arith.constant 0 : index
    %c0_44 = arith.constant 0 : index
    %72 = vector.load %arg2[%c6, %c0_43, %c0_44] : memref<8x6x5xf32, #tpu.memory_space<vmem>>, vector<1x6x5xf32>
    %73 = vector.shape_cast %72 : vector<1x6x5xf32> to vector<6x5xf32>
    %74 = vector.extract_strided_slice %73 {offsets = [0, 0], sizes = [5, 5], strides = [1, 1]} : vector<6x5xf32> to vector<5x5xf32>
    %75 = vector.extract_strided_slice %73 {offsets = [5, 0], sizes = [1, 5], strides = [1, 1]} : vector<6x5xf32> to vector<1x5xf32>
    %cst_45 = arith.constant dense<0.000000e+00> : vector<8x5xf32>
    %76 = tpu.matmul %71, %74, %cst_45 {dimension_numbers = #tpu.dot_dimension_numbers<[1], [0], [0], [1], [0, 0, 1, 1], [], []>} : vector<8x5xf32>, vector<5x5xf32>, vector<8x5xf32> -> vector<8x5xf32>
    %cst_46 = arith.constant dense<0.000000e+00> : vector<8x5xf32>
    %77 = tpu.matmul %1, %76, %cst_46 {dimension_numbers = #tpu.dot_dimension_numbers<[1], [0], [0], [1], [0, 0, 1, 1], [], []>} : vector<8x8xf32>, vector<8x5xf32>, vector<8x5xf32> -> vector<8x5xf32>
    %78 = vector.broadcast %75 : vector<1x5xf32> to vector<8x5xf32>
    %79 = arith.addf %77, %78 : vector<8x5xf32>
    %cst_47 = arith.constant 0.000000e+00 : f32
    %80 = vector.broadcast %cst_47 : f32 to vector<8x5xf32>
    %81 = arith.maximumf %79, %80 : vector<8x5xf32>
    %c7 = arith.constant 7 : index
    %c0_48 = arith.constant 0 : index
    %c0_49 = arith.constant 0 : index
    %82 = vector.load %arg2[%c7, %c0_48, %c0_49] : memref<8x6x5xf32, #tpu.memory_space<vmem>>, vector<1x6x5xf32>
    %83 = vector.shape_cast %82 : vector<1x6x5xf32> to vector<6x5xf32>
    %84 = vector.extract_strided_slice %83 {offsets = [0, 0], sizes = [5, 5], strides = [1, 1]} : vector<6x5xf32> to vector<5x5xf32>
    %85 = vector.extract_strided_slice %83 {offsets = [5, 0], sizes = [1, 5], strides = [1, 1]} : vector<6x5xf32> to vector<1x5xf32>
    %cst_50 = arith.constant dense<0.000000e+00> : vector<8x5xf32>
    %86 = tpu.matmul %81, %84, %cst_50 {dimension_numbers = #tpu.dot_dimension_numbers<[1], [0], [0], [1], [0, 0, 1, 1], [], []>} : vector<8x5xf32>, vector<5x5xf32>, vector<8x5xf32> -> vector<8x5xf32>
    %cst_51 = arith.constant dense<0.000000e+00> : vector<8x5xf32>
    %87 = tpu.matmul %1, %86, %cst_51 {dimension_numbers = #tpu.dot_dimension_numbers<[1], [0], [0], [1], [0, 0, 1, 1], [], []>} : vector<8x8xf32>, vector<8x5xf32>, vector<8x5xf32> -> vector<8x5xf32>
    %88 = vector.broadcast %85 : vector<1x5xf32> to vector<8x5xf32>
    %89 = arith.addf %87, %88 : vector<8x5xf32>
    %c0_52 = arith.constant 0 : index
    %c0_53 = arith.constant 0 : index
    %90 = vector.load %arg4[%c0_52, %c0_53] : memref<8x5xf32, #tpu.memory_space<vmem>>, vector<8x5xf32>
    tpu.vector_store %arg4[%c0_52, %c0_53], %89 {strides = array<i32>} : memref<8x5xf32, #tpu.memory_space<vmem>>, vector<8x5xf32>,
    return
  }
}

</mosaic_0001>

<llo_original>
// kernel: fused_forward.1
$region0: #{fused_forward.1}
  #allocation0 [shape = 'u32[]', space=smem, size = 0x4, offset = 0x4, fixed_abs, tag = 'smem constant byte address 0x4 - core index']
  #allocation1 [shape = 'u32[72,128]{1,0:T(1,128)}', space=vmem, size = 0x9000, scoped, tag = 'internal scratch']
  %s0 = inlined_call_operand.vmem [shape: f32[12,5], index: 0, kind: input, shape index: {}]
  %s1 = inlined_call_operand.vmem [shape: f32[8,20], index: 1, kind: input, shape index: {}]
  %s2 = inlined_call_operand.vmem [shape: f32[8,6,5], index: 2, kind: input, shape index: {}]
  %s3 = inlined_call_operand.vmem [shape: f32[3,8,5], index: 3, kind: input, shape index: {}]
  %s4 = inlined_call_operand.vmem [shape: f32[8,5], index: 4, kind: output, shape index: {}]
  %s5 = sld [smem:[#allocation0]]
  $region26: #{fused_forward.1} parent=0
    _
  %s7 = ssub.s32 1, %s5
  %s8 = scalar_select 0, %s7, %s5
  // Predicated region
  $region2: #{fused_forward.1} parent=0 // pred_check
    _
  $region3: #{fused_forward.1} parent=0 // pred_check_branch
    %10 = sbr.rel (0) target = $region5
  $region4: #{fused_forward.1} parent=0 // pred_region
    _
  $region5: #{fused_forward.1} parent=0 // pred_fallthru
    _
  // Predicated region
  $region6: #{fused_forward.1} parent=0 // pred_check
    _
  $region7: #{fused_forward.1} parent=0 // pred_check_branch
    %12 = sbr.rel (0) target = $region9
  $region8: #{fused_forward.1} parent=0 // pred_region
    _
  $region9: #{fused_forward.1} parent=0 // pred_fallthru
    _
  // Predicated region
  $region10: #{fused_forward.1} parent=0 // pred_check
    _
  $region11: #{fused_forward.1} parent=0 // pred_check_branch
    %14 = sbr.rel (0) target = $region13
  $region12: #{fused_forward.1} parent=0 // pred_region
    _
  $region13: #{fused_forward.1} parent=0 // pred_fallthru
    _
  // Predicated region
  $region14: #{fused_forward.1} parent=0 // pred_check
    _
  $region15: #{fused_forward.1} parent=0 // pred_check_branch
    %16 = sbr.rel (0) target = $region17
  $region16: #{fused_forward.1} parent=0 // pred_region
    _
  $region17: #{fused_forward.1} parent=0 // pred_fallthru
    _
  %v17 = vld [vmem:[%s1] sm:$0xff]
  %v18 = vld [vmem:[%s0] sm:$0xff]
  %v19 = vld [vmem:[%s0 + $0x8] sm:$0xf]
  %v20 = vld [vmem:[%s2] sm:$0x3f]
  %vm21 = vcmask 39936
  %v23 = vsel %vm21, %v18, 0
  %v26 = vsel %vm21, %v19, 0
  %vm28 = vcmask 1044480
  %v30 = vsel %vm28, %v20, 0
  %32 = vmatpush.msra.mxu0 0.0
  %33 = vmatpush.msra.mxu0 0.0
  %34 = vmatpush.msra.mxu0 0.0
  %35 = vmatpush.msra.mxu0 0.0
  %36 = vmatpush.msra.mxu0 0.0
  %37 = vmatpush.msra.mxu0 0.0
  %38 = vmatpush.msra.mxu0 0.0
  %39 = vmatpush.msra.mxu0 0.0
  %40 = vmatpush.msra.mxu0 0.0
  %41 = vmatpush.msra.mxu0 0.0
  %42 = vmatpush.msra.mxu0 0.0
  %43 = vmatpush.msra.mxu0 0.0
  %44 = vmatpush.msra.mxu0 0.0
  %45 = vmatpush.msra.mxu0 0.0
  %46 = vmatpush.msra.mxu0 0.0
  %47 = vmatpush.msra.mxu0 %v30
  %48 = vmatmul.f32.gmra.mxu0 %v23
  %v49 = vpop.f32.mrf.mxu0
  %v50 = vadd.f32 0.0, %v49
  %51 = vmatmul.f32.gmra.mxu0 %v26
  %v52 = vpop.f32.mrf.mxu0
  %v53 = vadd.f32 0.0, %v52
  %54 = vdwg.mxu0
  %v55 = vperm.slane %v20, 5
  %vm56 = vcmask 97280
  %v58 = vsel %vm56, %v17, 0
  %vm60 = vcmask 1043456
  %v62 = vsel %vm60, %v53, 0
  %64 = vmatpush.msra.mxu0 0.0
  %65 = vmatpush.msra.mxu0 0.0
  %66 = vmatpush.msra.mxu0 0.0
  %67 = vmatpush.msra.mxu0 0.0
  %68 = vmatpush.msra.mxu0 0.0
  %69 = vmatpush.msra.mxu0 0.0
  %70 = vmatpush.msra.mxu0 0.0
  %71 = vmatpush.msra.mxu0 0.0
  %72 = vmatpush.msra.mxu0 0.0
  %73 = vmatpush.msra.mxu0 0.0
  %74 = vmatpush.msra.mxu0 0.0
  %75 = vmatpush.msra.mxu0 0.0
  %76 = vmatpush.msra.mxu0 0.0
  %77 = vmatpush.msra.mxu0 0.0
  %78 = vmatpush.msra.mxu0 %v62
  %79 = vmatpush.msra.mxu0 %v50
  %80 = vmatmul.f32.gmra.mxu0 %v58
  %v81 = vpop.f32.mrf.mxu0
  %v82 = vadd.f32 %v55, %v81
  %83 = vdwg.mxu0
  %v84 = vmax.f32 %v82, 0.0
  %v85 = vld [vmem:[%s3] sm:$0xff]
  %v86 = vmul.f32 %v84, %v85
  %s87 = scalar_lea.vmem %s2, 8
  %v88 = vld [vmem:[%s87] sm:$0x3f]
  %v90 = vsel %vm21, %v86, 0
  %v93 = vsel %vm28, %v88, 0
  %95 = vmatpush.msra.mxu0 0.0
  %96 = vmatpush.msra.mxu0 0.0
  %97 = vmatpush.msra.mxu0 0.0
  %98 = vmatpush.msra.mxu0 0.0
  %99 = vmatpush.msra.mxu0 0.0
  %100 = vmatpush.msra.mxu0 0.0
  %101 = vmatpush.msra.mxu0 0.0
  %102 = vmatpush.msra.mxu0 0.0
  %103 = vmatpush.msra.mxu0 0.0
  %104 = vmatpush.msra.mxu0 0.0
  %105 = vmatpush.msra.mxu0 0.0
  %106 = vmatpush.msra.mxu0 0.0
  %107 = vmatpush.msra.mxu0 0.0
  %108 = vmatpush.msra.mxu0 0.0
  %109 = vmatpush.msra.mxu0 0.0
  %110 = vmatpush.msra.mxu0 %v93
  %111 = vmatmul.f32.gmra.mxu0 %v90
  %v112 = vpop.f32.mrf.mxu0
  %v113 = vadd.f32 0.0, %v112
  %114 = vdwg.mxu0
  %v115 = vperm.slane %v88, 5
  %116 = vrot.lane.b32.xlu0 %v17, 116
  %v117 = vpop.permute.xlu0 %116
  %vm118 = vcmask 64512
  %v119 = vsel %vm118, %v117, 0
  %121 = vmatpush.msra.mxu0 0.0
  %122 = vmatpush.msra.mxu0 0.0
  %123 = vmatpush.msra.mxu0 0.0
  %124 = vmatpush.msra.mxu0 0.0
  %125 = vmatpush.msra.mxu0 0.0
  %126 = vmatpush.msra.mxu0 0.0
  %127 = vmatpush.msra.mxu0 0.0
  %128 = vmatpush.msra.mxu0 0.0
  %129 = vmatpush.msra.mxu0 0.0
  %130 = vmatpush.msra.mxu0 0.0
  %131 = vmatpush.msra.mxu0 0.0
  %132 = vmatpush.msra.mxu0 0.0
  %133 = vmatpush.msra.mxu0 0.0
  %134 = vmatpush.msra.mxu0 0.0
  %135 = vmatpush.msra.mxu0 0.0
  %136 = vmatpush.msra.mxu0 %v113
  %137 = vmatmul.f32.gmra.mxu0 %v119
  %v138 = vpop.f32.mrf.mxu0
  %v139 = vadd.f32 %v115, %v138
  %140 = vdwg.mxu0
  %v141 = vmax.f32 %v139, 0.0
  %s142 = scalar_lea.vmem %s2, 16
  %v143 = vld [vmem:[%s142] sm:$0x3f]
  %v145 = vsel %vm21, %v141, 0
  %v148 = vsel %vm28, %v143, 0
  %150 = vmatpush.msra.mxu0 0.0
  %151 = vmatpush.msra.mxu0 0.0
  %152 = vmatpush.msra.mxu0 0.0
  %153 = vmatpush.msra.mxu0 0.0
  %154 = vmatpush.msra.mxu0 0.0
  %155 = vmatpush.msra.mxu0 0.0
  %156 = vmatpush.msra.mxu0 0.0
  %157 = vmatpush.msra.mxu0 0.0
  %158 = vmatpush.msra.mxu0 0.0
  %159 = vmatpush.msra.mxu0 0.0
  %160 = vmatpush.msra.mxu0 0.0
  %161 = vmatpush.msra.mxu0 0.0
  %162 = vmatpush.msra.mxu0 0.0
  %163 = vmatpush.msra.mxu0 0.0
  %164 = vmatpush.msra.mxu0 0.0
  %165 = vmatpush.msra.mxu0 %v148
  %166 = vmatmul.f32.gmra.mxu0 %v145
  %v167 = vpop.f32.mrf.mxu0
  %v168 = vadd.f32 0.0, %v167
  %169 = vdwg.mxu0
  %v170 = vperm.slane %v143, 5
  %171 = vmatpush.msra.mxu0 0.0
  %172 = vmatpush.msra.mxu0 0.0
  %173 = vmatpush.msra.mxu0 0.0
  %174 = vmatpush.msra.mxu0 0.0
  %175 = vmatpush.msra.mxu0 0.0
  %176 = vmatpush.msra.mxu0 0.0
  %177 = vmatpush.msra.mxu0 0.0
  %178 = vmatpush.msra.mxu0 0.0
  %179 = vmatpush.msra.mxu0 0.0
  %180 = vmatpush.msra.mxu0 0.0
  %181 = vmatpush.msra.mxu0 0.0
  %182 = vmatpush.msra.mxu0 0.0
  %183 = vmatpush.msra.mxu0 0.0
  %184 = vmatpush.msra.mxu0 0.0
  %185 = vmatpush.msra.mxu0 0.0
  %186 = vmatpush.msra.mxu0 %v168
  %187 = vmatmul.f32.gmra.mxu0 %v119
  %v188 = vpop.f32.mrf.mxu0
  %v189 = vadd.f32 %v170, %v188
  %190 = vdwg.mxu0
  %v191 = vmax.f32 %v189, 0.0
  %s192 = scalar_lea.vmem %s3, 8
  %v193 = vld [vmem:[%s192] sm:$0xff]
  %v194 = vmul.f32 %v191, %v193
  %s195 = scalar_lea.vmem %s2, 24
  %v196 = vld [vmem:[%s195] sm:$0x3f]
  %v198 = vsel %vm21, %v194, 0
  %v201 = vsel %vm28, %v196, 0
  %203 = vmatpush.msra.mxu0 0.0
  %204 = vmatpush.msra.mxu0 0.0
  %205 = vmatpush.msra.mxu0 0.0
  %206 = vmatpush.msra.mxu0 0.0
  %207 = vmatpush.msra.mxu0 0.0
  %208 = vmatpush.msra.mxu0 0.0
  %209 = vmatpush.msra.mxu0 0.0
  %210 = vmatpush.msra.mxu0 0.0
  %211 = vmatpush.msra.mxu0 0.0
  %212 = vmatpush.msra.mxu0 0.0
  %213 = vmatpush.msra.mxu0 0.0
  %214 = vmatpush.msra.mxu0 0.0
  %215 = vmatpush.msra.mxu0 0.0
  %216 = vmatpush.msra.mxu0 0.0
  %217 = vmatpush.msra.mxu0 0.0
  %218 = vmatpush.msra.mxu0 %v201
  %219 = vmatmul.f32.gmra.mxu0 %v198
  %v220 = vpop.f32.mrf.mxu0
  %v221 = vadd.f32 0.0, %v220
  %222 = vdwg.mxu0
  %v223 = vperm.slane %v196, 5
  %224 = vmatpush.msra.mxu0 0.0
  %225 = vmatpush.msra.mxu0 0.0
  %226 = vmatpush.msra.mxu0 0.0
  %227 = vmatpush.msra.mxu0 0.0
  %228 = vmatpush.msra.mxu0 0.0
  %229 = vmatpush.msra.mxu0 0.0
  %230 = vmatpush.msra.mxu0 0.0
  %231 = vmatpush.msra.mxu0 0.0
  %232 = vmatpush.msra.mxu0 0.0
  %233 = vmatpush.msra.mxu0 0.0
  %234 = vmatpush.msra.mxu0 0.0
  %235 = vmatpush.msra.mxu0 0.0
  %236 = vmatpush.msra.mxu0 0.0
  %237 = vmatpush.msra.mxu0 0.0
  %238 = vmatpush.msra.mxu0 0.0
  %239 = vmatpush.msra.mxu0 %v221
  %240 = vmatmul.f32.gmra.mxu0 %v119
  %v241 = vpop.f32.mrf.mxu0
  %v242 = vadd.f32 %v223, %v241
  %243 = vdwg.mxu0
  %v244 = vmax.f32 %v242, 0.0
  %s245 = scalar_lea.vmem %s2, 32
  %v246 = vld [vmem:[%s245] sm:$0x3f]
  %v248 = vsel %vm21, %v244, 0
  %v251 = vsel %vm28, %v246, 0
  %253 = vmatpush.msra.mxu0 0.0
  %254 = vmatpush.msra.mxu0 0.0
  %255 = vmatpush.msra.mxu0 0.0
  %256 = vmatpush.msra.mxu0 0.0
  %257 = vmatpush.msra.mxu0 0.0
  %258 = vmatpush.msra.mxu0 0.0
  %259 = vmatpush.msra.mxu0 0.0
  %260 = vmatpush.msra.mxu0 0.0
  %261 = vmatpush.msra.mxu0 0.0
  %262 = vmatpush.msra.mxu0 0.0
  %263 = vmatpush.msra.mxu0 0.0
  %264 = vmatpush.msra.mxu0 0.0
  %265 = vmatpush.msra.mxu0 0.0
  %266 = vmatpush.msra.mxu0 0.0
  %267 = vmatpush.msra.mxu0 0.0
  %268 = vmatpush.msra.mxu0 %v251
  %269 = vmatmul.f32.gmra.mxu0 %v248
  %v270 = vpop.f32.mrf.mxu0
  %v271 = vadd.f32 0.0, %v270
  %272 = vdwg.mxu0
  %v273 = vperm.slane %v246, 5
  %274 = vmatpush.msra.mxu0 0.0
  %275 = vmatpush.msra.mxu0 0.0
  %276 = vmatpush.msra.mxu0 0.0
  %277 = vmatpush.msra.mxu0 0.0
  %278 = vmatpush.msra.mxu0 0.0
  %279 = vmatpush.msra.mxu0 0.0
  %280 = vmatpush.msra.mxu0 0.0
  %281 = vmatpush.msra.mxu0 0.0
  %282 = vmatpush.msra.mxu0 0.0
  %283 = vmatpush.msra.mxu0 0.0
  %284 = vmatpush.msra.mxu0 0.0
  %285 = vmatpush.msra.mxu0 0.0
  %286 = vmatpush.msra.mxu0 0.0
  %287 = vmatpush.msra.mxu0 0.0
  %288 = vmatpush.msra.mxu0 0.0
  %289 = vmatpush.msra.mxu0 %v271
  %290 = vmatmul.f32.gmra.mxu0 %v119
  %v291 = vpop.f32.mrf.mxu0
  %v292 = vadd.f32 %v273, %v291
  %293 = vdwg.mxu0
  %v294 = vmax.f32 %v292, 0.0
  %s295 = scalar_lea.vmem %s3, 16
  %v296 = vld [vmem:[%s295] sm:$0xff]
  %v297 = vmul.f32 %v294, %v296
  %s298 = scalar_lea.vmem %s2, 40
  %v299 = vld [vmem:[%s298] sm:$0x3f]
  %v301 = vsel %vm21, %v297, 0
  %v304 = vsel %vm28, %v299, 0
  %306 = vmatpush.msra.mxu0 0.0
  %307 = vmatpush.msra.mxu0 0.0
  %308 = vmatpush.msra.mxu0 0.0
  %309 = vmatpush.msra.mxu0 0.0
  %310 = vmatpush.msra.mxu0 0.0
  %311 = vmatpush.msra.mxu0 0.0
  %312 = vmatpush.msra.mxu0 0.0
  %313 = vmatpush.msra.mxu0 0.0
  %314 = vmatpush.msra.mxu0 0.0
  %315 = vmatpush.msra.mxu0 0.0
  %316 = vmatpush.msra.mxu0 0.0
  %317 = vmatpush.msra.mxu0 0.0
  %318 = vmatpush.msra.mxu0 0.0
  %319 = vmatpush.msra.mxu0 0.0
  %320 = vmatpush.msra.mxu0 0.0
  %321 = vmatpush.msra.mxu0 %v304
  %322 = vmatmul.f32.gmra.mxu0 %v301
  %v323 = vpop.f32.mrf.mxu0
  %v324 = vadd.f32 0.0, %v323
  %325 = vdwg.mxu0
  %v326 = vperm.slane %v299, 5
  %327 = vmatpush.msra.mxu0 0.0
  %328 = vmatpush.msra.mxu0 0.0
  %329 = vmatpush.msra.mxu0 0.0
  %330 = vmatpush.msra.mxu0 0.0
  %331 = vmatpush.msra.mxu0 0.0
  %332 = vmatpush.msra.mxu0 0.0
  %333 = vmatpush.msra.mxu0 0.0
  %334 = vmatpush.msra.mxu0 0.0
  %335 = vmatpush.msra.mxu0 0.0
  %336 = vmatpush.msra.mxu0 0.0
  %337 = vmatpush.msra.mxu0 0.0
  %338 = vmatpush.msra.mxu0 0.0
  %339 = vmatpush.msra.mxu0 0.0
  %340 = vmatpush.msra.mxu0 0.0
  %341 = vmatpush.msra.mxu0 0.0
  %342 = vmatpush.msra.mxu0 %v324
  %343 = vmatmul.f32.gmra.mxu0 %v119
  %v344 = vpop.f32.mrf.mxu0
  %v345 = vadd.f32 %v326, %v344
  %346 = vdwg.mxu0
  %v347 = vmax.f32 %v345, 0.0
  %s348 = scalar_lea.vmem %s2, 48
  %v349 = vld [vmem:[%s348] sm:$0x3f]
  %v351 = vsel %vm21, %v347, 0
  %v354 = vsel %vm28, %v349, 0
  %356 = vmatpush.msra.mxu0 0.0
  %357 = vmatpush.msra.mxu0 0.0
  %358 = vmatpush.msra.mxu0 0.0
  %359 = vmatpush.msra.mxu0 0.0
  %360 = vmatpush.msra.mxu0 0.0
  %361 = vmatpush.msra.mxu0 0.0
  %362 = vmatpush.msra.mxu0 0.0
  %363 = vmatpush.msra.mxu0 0.0
  %364 = vmatpush.msra.mxu0 0.0
  %365 = vmatpush.msra.mxu0 0.0
  %366 = vmatpush.msra.mxu0 0.0
  %367 = vmatpush.msra.mxu0 0.0
  %368 = vmatpush.msra.mxu0 0.0
  %369 = vmatpush.msra.mxu0 0.0
  %370 = vmatpush.msra.mxu0 0.0
  %371 = vmatpush.msra.mxu0 %v354
  %372 = vmatmul.f32.gmra.mxu0 %v351
  %v373 = vpop.f32.mrf.mxu0
  %v374 = vadd.f32 0.0, %v373
  %375 = vdwg.mxu0
  %v376 = vperm.slane %v349, 5
  %377 = vmatpush.msra.mxu0 0.0
  %378 = vmatpush.msra.mxu0 0.0
  %379 = vmatpush.msra.mxu0 0.0
  %380 = vmatpush.msra.mxu0 0.0
  %381 = vmatpush.msra.mxu0 0.0
  %382 = vmatpush.msra.mxu0 0.0
  %383 = vmatpush.msra.mxu0 0.0
  %384 = vmatpush.msra.mxu0 0.0
  %385 = vmatpush.msra.mxu0 0.0
  %386 = vmatpush.msra.mxu0 0.0
  %387 = vmatpush.msra.mxu0 0.0
  %388 = vmatpush.msra.mxu0 0.0
  %389 = vmatpush.msra.mxu0 0.0
  %390 = vmatpush.msra.mxu0 0.0
  %391 = vmatpush.msra.mxu0 0.0
  %392 = vmatpush.msra.mxu0 %v374
  %393 = vmatmul.f32.gmra.mxu0 %v119
  %v394 = vpop.f32.mrf.mxu0
  %v395 = vadd.f32 %v376, %v394
  %396 = vdwg.mxu0
  %v397 = vmax.f32 %v395, 0.0
  %s398 = scalar_lea.vmem %s2, 56
  %v399 = vld [vmem:[%s398] sm:$0x3f]
  %v401 = vsel %vm21, %v397, 0
  %v404 = vsel %vm28, %v399, 0
  %406 = vmatpush.msra.mxu0 0.0
  %407 = vmatpush.msra.mxu0 0.0
  %408 = vmatpush.msra.mxu0 0.0
  %409 = vmatpush.msra.mxu0 0.0
  %410 = vmatpush.msra.mxu0 0.0
  %411 = vmatpush.msra.mxu0 0.0
  %412 = vmatpush.msra.mxu0 0.0
  %413 = vmatpush.msra.mxu0 0.0
  %414 = vmatpush.msra.mxu0 0.0
  %415 = vmatpush.msra.mxu0 0.0
  %416 = vmatpush.msra.mxu0 0.0
  %417 = vmatpush.msra.mxu0 0.0
  %418 = vmatpush.msra.mxu0 0.0
  %419 = vmatpush.msra.mxu0 0.0
  %420 = vmatpush.msra.mxu0 0.0
  %421 = vmatpush.msra.mxu0 %v404
  %422 = vmatmul.f32.gmra.mxu0 %v401
  %v423 = vpop.f32.mrf.mxu0
  %v424 = vadd.f32 0.0, %v423
  %425 = vdwg.mxu0
  %v426 = vperm.slane %v399, 5
  %427 = vmatpush.msra.mxu0 0.0
  %428 = vmatpush.msra.mxu0 0.0
  %429 = vmatpush.msra.mxu0 0.0
  %430 = vmatpush.msra.mxu0 0.0
  %431 = vmatpush.msra.mxu0 0.0
  %432 = vmatpush.msra.mxu0 0.0
  %433 = vmatpush.msra.mxu0 0.0
  %434 = vmatpush.msra.mxu0 0.0
  %435 = vmatpush.msra.mxu0 0.0
  %436 = vmatpush.msra.mxu0 0.0
  %437 = vmatpush.msra.mxu0 0.0
  %438 = vmatpush.msra.mxu0 0.0
  %439 = vmatpush.msra.mxu0 0.0
  %440 = vmatpush.msra.mxu0 0.0
  %441 = vmatpush.msra.mxu0 0.0
  %442 = vmatpush.msra.mxu0 %v424
  %443 = vmatmul.f32.gmra.mxu0 %v119
  %v444 = vpop.f32.mrf.mxu0
  %v445 = vadd.f32 %v426, %v444
  %446 = vdwg.mxu0
  %447 = vst.msk [vmem:[%s4] sm:$0xff] %vm21, %v445
  // Predicated region
  $region18: #{fused_forward.1} parent=0 // pred_check
    _
  $region19: #{fused_forward.1} parent=0 // pred_check_branch
    %449 = sbr.rel (0) target = $region21
  $region20: #{fused_forward.1} parent=0 // pred_region
    _
  $region21: #{fused_forward.1} parent=0 // pred_fallthru
    _
  // Predicated region
  $region22: #{fused_forward.1} parent=0 // pred_check
    _
  $region23: #{fused_forward.1} parent=0 // pred_check_branch
    %451 = sbr.rel (0) target = $region25
  $region24: #{fused_forward.1} parent=0 // pred_region
    _
  $region25: #{fused_forward.1} parent=0 // pred_fallthru
    _

</llo_original>
